<compile_context>
chip_gen: v7x
topology: tpu7x:2x2x1
jax: 0.10.0
libtpu: 0.0.40
codegen_flags: <defaults>
</compile_context>

<pallas_src>
import functools

import jax
import jax.numpy as jnp
from jax.experimental import pallas as pl
from jax.experimental.pallas import tpu as pltpu


def _grouped_conv_kernel(x_ref, w_ref, o_ref, *, n_batch, cin_pg, KH, KW, Wp, Lout):
    """One group of the grouped 3x3 convolution (all N samples in the block).

    x_ref: (N, 1, cin_pg, Lflat)        bf16  flat padded images (+ zero tail)
    w_ref: (1, cout_pg, KH*KW*cin_pg)   bf16  im2col weights for this group
    o_ref: (N, 1, cout_pg, Lout)        f32   outputs on the padded flat grid
    """
    w = w_ref[0, :, :]                              # (cout_pg, KH*KW*cin_pg) bf16

    for n in range(n_batch):                        # unrolled: N is small/static
        xs = x_ref[n, 0, :, :]                      # (cin_pg, Lflat) bf16
        # im2col patch as a value: tap (kh, kw) is a constant flat lane shift
        # of the padded image; rows ordered (kh, kw, c) to match the weights.
        taps = []
        for kh in range(KH):
            for kw in range(KW):
                delta = kh * Wp + kw
                taps.append(xs[:, delta:delta + Lout])
        patch = jnp.concatenate(taps, axis=0)       # (KH*KW*cin_pg, Lout) bf16

        # Single fused K = KH*KW*cin_pg MXU matmul, f32 accumulation; the
        # output minor (lane) dim is the lane-dense 384-wide flat spatial axis.
        acc = jnp.dot(w, patch, preferred_element_type=jnp.float32)
        o_ref[n, 0, :, :] = acc.astype(o_ref.dtype)


def learned_dw_conv_forward(x_nchw, dw_weight, mask_dw, *, group, stride=1):
    """Forward of Learned_Dw_Conv for global_progress < 100."""
    assert stride == 1, "only stride=1 implemented for this synthetic kernel"
    N, Cin, H, W = x_nchw.shape
    OC, cin_pg, KH, KW = dw_weight.shape
    cout_pg = OC // group
    assert Cin == group * cin_pg

    pad = 1                                   # hard-coded in the module's F.conv2d
    Hp, Wp = H + 2 * pad, W + 2 * pad
    Lq = Hp * Wp                              # flat padded-grid length (324)
    Lout = ((Lq + 127) // 128) * 128          # lane-dense output columns (384)
    max_delta = (KH - 1) * Wp + (KW - 1)      # largest tap shift (38)
    Lflat = ((Lout + max_delta + 127) // 128) * 128   # covers all shifted reads

    # Masked weights -> (group, cout_pg, KH*KW*cin_pg), row = (kh*KW+kw)*cin_pg + c.
    weight = (dw_weight * mask_dw).astype(jnp.bfloat16)
    wg = weight.reshape(group, cout_pg, cin_pg, KH, KW).transpose(0, 1, 3, 4, 2)
    wg = wg.reshape(group, cout_pg, KH * KW * cin_pg)

    # Activations: cast once to bf16, pad spatially by 1, flatten row-major so
    # every 3x3 tap becomes a constant lane shift, zero-pad the flat tail.
    # Layout stays (N, group, ...): pure pads/reshapes, no HBM transposes.
    xb = x_nchw.astype(jnp.bfloat16)
    xp = jnp.pad(xb, ((0, 0), (0, 0), (pad, pad), (pad, pad)))
    xg = xp.reshape(N, group, cin_pg, Lq)
    xg = jnp.pad(xg, ((0, 0), (0, 0), (0, 0), (0, Lflat - Lq)))

    kernel = functools.partial(_grouped_conv_kernel, n_batch=N, cin_pg=cin_pg,
                               KH=KH, KW=KW, Wp=Wp, Lout=Lout)

    flops = 2 * N * OC * cin_pg * KH * KW * H * W
    bytes_accessed = (N * group * cin_pg * Lflat) * 2 \
        + (group * cout_pg * KH * KW * cin_pg) * 2 \
        + (N * group * cout_pg * Lout) * 4

    out_flat = pl.pallas_call(
        kernel,
        out_shape=jax.ShapeDtypeStruct((N, group, cout_pg, Lout), x_nchw.dtype),
        grid_spec=pl.GridSpec(
            grid=(group,),
            in_specs=[
                pl.BlockSpec((N, 1, cin_pg, Lflat), lambda g: (0, g, 0, 0)),
                pl.BlockSpec((1, cout_pg, KH * KW * cin_pg), lambda g: (g, 0, 0)),
            ],
            out_specs=pl.BlockSpec((N, 1, cout_pg, Lout), lambda g: (0, g, 0, 0)),
        ),
        compiler_params=pltpu.CompilerParams(
            dimension_semantics=("parallel",)),
        cost_estimate=pl.CostEstimate(flops=flops, transcendentals=0,
                                      bytes_accessed=bytes_accessed),
    )(xg, wg)

    # (N, group, cout_pg, Lout) -> crop lane tail -> padded grid -> crop halo,
    # then collapse (group, cout_pg) -> OC with oc = g * cout_pg + oc_local.
    out = out_flat[..., :Lq].reshape(N, group, cout_pg, Hp, Wp)[:, :, :, :H, :W]
    return out.reshape(N, OC, H, W)


if __name__ == "__main__":
    # Module config (matches Learned_Dw_Conv.__init__ constraints):
    #   in_channels=16, out_channels=16, fiter_kernel=3, stride=1, padding=1,
    #   dropout_rate=0, k=4, cardinality=8
    in_channels, out_channels, cardinality = 16, 16, 8
    group = out_channels // cardinality               # 2
    cin_pg = in_channels // group                     # 8
    KH = KW = 3

    N, H, W = 2, 16, 16

    key = jax.random.PRNGKey(0)
    kx, kw = jax.random.split(key)
    x = jax.random.normal(kx, (N, in_channels, H, W), dtype=jnp.float32)
    # dwconv.weight: (out_channels, in_channels // group, 3, 3)
    dw_weight = 0.1 * jax.random.normal(
        kw, (out_channels, cin_pg, KH, KW), dtype=jnp.float32)
    mask_dw = jnp.ones_like(dw_weight)                # buffer '_mask_dw' init

    fwd = jax.jit(functools.partial(learned_dw_conv_forward,
                                    group=group, stride=1))
    out = jax.block_until_ready(fwd(x, dw_weight, mask_dw))

    # Reference: grouped conv (same semantics as F.conv2d groups=group) in f32
    # on the same bf16-rounded operands the kernel feeds to the MXU, so only
    # accumulation-order differences remain.
    xq = x.astype(jnp.bfloat16).astype(jnp.float32)
    wq = (dw_weight * mask_dw).astype(jnp.bfloat16).astype(jnp.float32)
    ref = jax.lax.conv_general_dilated(
        xq, wq, window_strides=(1, 1), padding=((1, 1), (1, 1)),
        dimension_numbers=("NCHW", "OIHW", "NCHW"), feature_group_count=group,
        precision=jax.lax.Precision.HIGHEST)

    assert out.shape == ref.shape == (N, out_channels, H, W)
    assert jnp.allclose(out, ref, atol=2e-3, rtol=2e-3), "mismatch vs reference"

    print("KERNEL_OK")
</pallas_src>

<mosaic_0001>
module attributes {stable_mosaic.version = 11 : i64} {
  func.func @_grouped_conv_kernel(%arg0: i32, %arg1: memref<2x1x8x512xbf16, #tpu.memory_space<vmem>>, %arg2: memref<1x8x72xbf16, #tpu.memory_space<vmem>>, %arg3: memref<2x1x8x384xf32, #tpu.memory_space<vmem>>) attributes {dimension_semantics = [#tpu.dimension_semantics<parallel>], iteration_bounds = array<i64: 2>, scalar_prefetch = 0 : i64, scratch_operands = 0 : i64, tpu.core_type = #tpu.core_type<tc>, window_params = [{transform_indices = @transform_0, window_bounds = array<i64: 2, 1, 8, 512>}, {transform_indices = @transform_1, window_bounds = array<i64: 1, 8, 72>}, {transform_indices = @transform_2, window_bounds = array<i64: 2, 1, 8, 384>}]} {
    %c0 = arith.constant 0 : index
    %c0_0 = arith.constant 0 : index
    %c0_1 = arith.constant 0 : index
    %0 = vector.load %arg2[%c0, %c0_0, %c0_1] : memref<1x8x72xbf16, #tpu.memory_space<vmem>>, vector<1x8x72xbf16>
    %1 = vector.shape_cast %0 : vector<1x8x72xbf16> to vector<8x72xbf16>
    %c0_2 = arith.constant 0 : index
    %c0_3 = arith.constant 0 : index
    %c0_4 = arith.constant 0 : index
    %c0_5 = arith.constant 0 : index
    %2 = vector.load %arg1[%c0_2, %c0_3, %c0_4, %c0_5] : memref<2x1x8x512xbf16, #tpu.memory_space<vmem>>, vector<1x1x8x512xbf16>
    %3 = vector.shape_cast %2 : vector<1x1x8x512xbf16> to vector<8x512xbf16>
    %4 = vector.extract_strided_slice %3 {offsets = [0, 0], sizes = [8, 384], strides = [1, 1]} : vector<8x512xbf16> to vector<8x384xbf16>
    %5 = vector.extract_strided_slice %3 {offsets = [0, 1], sizes = [8, 384], strides = [1, 1]} : vector<8x512xbf16> to vector<8x384xbf16>
    %6 = vector.extract_strided_slice %3 {offsets = [0, 2], sizes = [8, 384], strides = [1, 1]} : vector<8x512xbf16> to vector<8x384xbf16>
    %7 = vector.extract_strided_slice %3 {offsets = [0, 18], sizes = [8, 384], strides = [1, 1]} : vector<8x512xbf16> to vector<8x384xbf16>
    %8 = vector.extract_strided_slice %3 {offsets = [0, 19], sizes = [8, 384], strides = [1, 1]} : vector<8x512xbf16> to vector<8x384xbf16>
    %9 = vector.extract_strided_slice %3 {offsets = [0, 20], sizes = [8, 384], strides = [1, 1]} : vector<8x512xbf16> to vector<8x384xbf16>
    %10 = vector.extract_strided_slice %3 {offsets = [0, 36], sizes = [8, 384], strides = [1, 1]} : vector<8x512xbf16> to vector<8x384xbf16>
    %11 = vector.extract_strided_slice %3 {offsets = [0, 37], sizes = [8, 384], strides = [1, 1]} : vector<8x512xbf16> to vector<8x384xbf16>
    %12 = vector.extract_strided_slice %3 {offsets = [0, 38], sizes = [8, 384], strides = [1, 1]} : vector<8x512xbf16> to vector<8x384xbf16>
    %13 = tpu.concatenate %4, %5, %6, %7, %8, %9, %10, %11, %12 in 0 : vector<8x384xbf16>, vector<8x384xbf16>, vector<8x384xbf16>, vector<8x384xbf16>, vector<8x384xbf16>, vector<8x384xbf16>, vector<8x384xbf16>, vector<8x384xbf16>, vector<8x384xbf16> -> vector<72x384xbf16>
    %cst = arith.constant dense<0.000000e+00> : vector<8x384xf32>
    %14 = tpu.matmul %1, %13, %cst {dimension_numbers = #tpu.dot_dimension_numbers<[1], [0], [0], [1], [0, 0, 1, 1], [], []>} : vector<8x72xbf16>, vector<72x384xbf16>, vector<8x384xf32> -> vector<8x384xf32>
    %c0_6 = arith.constant 0 : index
    %c0_7 = arith.constant 0 : index
    %c0_8 = arith.constant 0 : index
    %c0_9 = arith.constant 0 : index
    %15 = vector.load %arg3[%c0_6, %c0_7, %c0_8, %c0_9] : memref<2x1x8x384xf32, #tpu.memory_space<vmem>>, vector<1x1x8x384xf32>
    %16 = vector.shape_cast %15 : vector<1x1x8x384xf32> to vector<8x384xf32>
    %17 = vector.shape_cast %14 : vector<8x384xf32> to vector<1x1x8x384xf32>
    tpu.vector_store %arg3[%c0_6, %c0_7, %c0_8, %c0_9], %17 {strides = array<i32>} : memref<2x1x8x384xf32, #tpu.memory_space<vmem>>, vector<1x1x8x384xf32>,
    %c1 = arith.constant 1 : index
    %c0_10 = arith.constant 0 : index
    %c0_11 = arith.constant 0 : index
    %c0_12 = arith.constant 0 : index
    %18 = vector.load %arg1[%c1, %c0_10, %c0_11, %c0_12] : memref<2x1x8x512xbf16, #tpu.memory_space<vmem>>, vector<1x1x8x512xbf16>
    %19 = vector.shape_cast %18 : vector<1x1x8x512xbf16> to vector<8x512xbf16>
    %20 = vector.extract_strided_slice %19 {offsets = [0, 0], sizes = [8, 384], strides = [1, 1]} : vector<8x512xbf16> to vector<8x384xbf16>
    %21 = vector.extract_strided_slice %19 {offsets = [0, 1], sizes = [8, 384], strides = [1, 1]} : vector<8x512xbf16> to vector<8x384xbf16>
    %22 = vector.extract_strided_slice %19 {offsets = [0, 2], sizes = [8, 384], strides = [1, 1]} : vector<8x512xbf16> to vector<8x384xbf16>
    %23 = vector.extract_strided_slice %19 {offsets = [0, 18], sizes = [8, 384], strides = [1, 1]} : vector<8x512xbf16> to vector<8x384xbf16>
    %24 = vector.extract_strided_slice %19 {offsets = [0, 19], sizes = [8, 384], strides = [1, 1]} : vector<8x512xbf16> to vector<8x384xbf16>
    %25 = vector.extract_strided_slice %19 {offsets = [0, 20], sizes = [8, 384], strides = [1, 1]} : vector<8x512xbf16> to vector<8x384xbf16>
    %26 = vector.extract_strided_slice %19 {offsets = [0, 36], sizes = [8, 384], strides = [1, 1]} : vector<8x512xbf16> to vector<8x384xbf16>
    %27 = vector.extract_strided_slice %19 {offsets = [0, 37], sizes = [8, 384], strides = [1, 1]} : vector<8x512xbf16> to vector<8x384xbf16>
    %28 = vector.extract_strided_slice %19 {offsets = [0, 38], sizes = [8, 384], strides = [1, 1]} : vector<8x512xbf16> to vector<8x384xbf16>
    %29 = tpu.concatenate %20, %21, %22, %23, %24, %25, %26, %27, %28 in 0 : vector<8x384xbf16>, vector<8x384xbf16>, vector<8x384xbf16>, vector<8x384xbf16>, vector<8x384xbf16>, vector<8x384xbf16>, vector<8x384xbf16>, vector<8x384xbf16>, vector<8x384xbf16> -> vector<72x384xbf16>
    %cst_13 = arith.constant dense<0.000000e+00> : vector<8x384xf32>
    %30 = tpu.matmul %1, %29, %cst_13 {dimension_numbers = #tpu.dot_dimension_numbers<[1], [0], [0], [1], [0, 0, 1, 1], [], []>} : vector<8x72xbf16>, vector<72x384xbf16>, vector<8x384xf32> -> vector<8x384xf32>
    %c1_14 = arith.constant 1 : index
    %c0_15 = arith.constant 0 : index
    %c0_16 = arith.constant 0 : index
    %c0_17 = arith.constant 0 : index
    %31 = vector.load %arg3[%c1_14, %c0_15, %c0_16, %c0_17] : memref<2x1x8x384xf32, #tpu.memory_space<vmem>>, vector<1x1x8x384xf32>
    %32 = vector.shape_cast %31 : vector<1x1x8x384xf32> to vector<8x384xf32>
    %33 = vector.shape_cast %30 : vector<8x384xf32> to vector<1x1x8x384xf32>
    tpu.vector_store %arg3[%c1_14, %c0_15, %c0_16, %c0_17], %33 {strides = array<i32>} : memref<2x1x8x384xf32, #tpu.memory_space<vmem>>, vector<1x1x8x384xf32>,
    return
  }
  func.func @transform_0(%arg0: i32) -> (i32, i32, i32, i32) {
    %c0_i32 = arith.constant 0 : i32
    %c0_i32_0 = arith.constant 0 : i32
    %c0_i32_1 = arith.constant 0 : i32
    %c0_i32_2 = arith.constant 0 : i32
    return %c0_i32, %arg0, %c0_i32_0, %c0_i32_1 : i32, i32, i32, i32
  }
  func.func @transform_1(%arg0: i32) -> (i32, i32, i32) {
    %c0_i32 = arith.constant 0 : i32
    %c0_i32_0 = arith.constant 0 : i32
    %c0_i32_1 = arith.constant 0 : i32
    return %arg0, %c0_i32, %c0_i32_0 : i32, i32, i32
  }
  func.func @transform_2(%arg0: i32) -> (i32, i32, i32, i32) {
    %c0_i32 = arith.constant 0 : i32
    %c0_i32_0 = arith.constant 0 : i32
    %c0_i32_1 = arith.constant 0 : i32
    %c0_i32_2 = arith.constant 0 : i32
    return %c0_i32, %arg0, %c0_i32_0, %c0_i32_1 : i32, i32, i32, i32
  }
}

</mosaic_0001>

<llo_original>
// kernel: learned_dw_conv_forward.1
$region0: #{learned_dw_conv_forward.1}
  #allocation0 [shape = 'u32[]', space=smem, size = 0x4, offset = 0x4, fixed_abs, tag = 'smem constant byte address 0x4 - core index']
  #allocation1 [shape = 'u32[144,128]{1,0:T(1,128)}', space=vmem, size = 0x12000, scoped, tag = 'internal scratch']
  %s0 = inlined_call_operand.vmem [shape: bf16[2,2,8,512], index: 0, kind: input, shape index: {}]
  %s1 = inlined_call_operand.vmem [shape: bf16[2,8,72], index: 1, kind: input, shape index: {}]
  %s2 = inlined_call_operand.vmem [shape: f32[2,2,8,384], index: 2, kind: output, shape index: {}]
  %s3 = sld [smem:[#allocation0]]
  $region83: #{learned_dw_conv_forward.1} parent=0
    _
  %s5 = ssub.s32 1, %s3
  %s6 = scalar_select 0, %s5, %s3
  $region1: #{learned_dw_conv_forward.1} parent=0
    #allocation2 [shape = 'u8[32768]{0}', space=vmem, size = 0x8000, scoped, tag = 'input window, operand 0']
    #allocation3 [shape = 'u8[49152]{0}', space=vmem, size = 0xc000, scoped, tag = 'output window, operand 0']
    loop: start=0, step=1, limit=4
    $region2: #{learned_dw_conv_forward.1} parent=1 // loop_pre_header
      _
    $region3: #{learned_dw_conv_forward.1} parent=1 // loop_header
      %s8 = sphi 0, %s12
      %p9 = scmp.ge.s32.totalorder %s8, 4
      %s18 = sphi 0, %s20
      %s21 = sphi 0, %s18
      %s22 = sphi 0, %s21
      %s38 = sphi 0, %s22
      %s44 = sphi 0, %s46
      %s47 = sphi 0, %s44
      %s48 = sphi 0, %s47
      %s64 = sphi 0, %s48
      %s70 = sphi 0, %s72
      %s73 = sphi 0, %s70
      %s74 = sphi 0, %s73
      %s90 = sphi 0, %s74
    $region4: #{learned_dw_conv_forward.1} parent=1 // loop_header_branch
      %11 = sbr.rel (%p9) target = $region8
    $region5: #{learned_dw_conv_forward.1} parent=1 // loop_body
      %s13 = ssub.s32 %s8, 1
      %s14 = ssub.s32 %s8, 2
      %s15 = sadd.s32 %s8, 1
      %s16 = ssub.s32 %s8, %s15
      %p17 = scmp.eq.s32.totalorder %s16, 0
      %s19 = sadd.s32 %s18, 1
      %s20 = scalar_select %p17, %s18, %s19
      %p23 = pneg %p17
      %p24 = scmp.eq.s32.totalorder %s8, 1
      %p25 = por %p23, %p24
      %p26 = scmp.ne.s32.totalorder %s18, %s21
      %p27 = scmp.eq.s32.totalorder %s8, 0
      %p28 = por %p26, %p27
      %p29 = scmp.ne.s32.totalorder %s18, %s21
      %p30 = scmp.eq.s32.totalorder %s13, 1
      %p31 = por %p29, %p30
      %p32 = scmp.ne.s32.totalorder %s21, %s22
      %p33 = scmp.eq.s32.totalorder %s13, 0
      %p34 = por %p32, %p33
      %p35 = scmp.ne.s32.totalorder %s21, %s22
      %p36 = scmp.eq.s32.totalorder %s14, 1
      %p37 = por %p35, %p36
      %p39 = scmp.ne.s32.totalorder %s22, %s38
      %p40 = scmp.eq.s32.totalorder %s14, 0
      %p41 = por %p39, %p40
      %s42 = ssub.s32 %s8, %s15
      %p43 = scmp.eq.s32.totalorder %s42, 0
      %s45 = sadd.s32 %s44, 1
      %s46 = scalar_select %p43, %s44, %s45
      %p49 = pneg %p43
      %p50 = scmp.eq.s32.totalorder %s8, 1
      %p51 = por %p49, %p50
      %p52 = scmp.ne.s32.totalorder %s44, %s47
      %p53 = scmp.eq.s32.totalorder %s8, 0
      %p54 = por %p52, %p53
      %p55 = scmp.ne.s32.totalorder %s44, %s47
      %p56 = scmp.eq.s32.totalorder %s13, 1
      %p57 = por %p55, %p56
      %p58 = scmp.ne.s32.totalorder %s47, %s48
      %p59 = scmp.eq.s32.totalorder %s13, 0
      %p60 = por %p58, %p59
      %p61 = scmp.ne.s32.totalorder %s47, %s48
      %p62 = scmp.eq.s32.totalorder %s14, 1
      %p63 = por %p61, %p62
      %p65 = scmp.ne.s32.totalorder %s48, %s64
      %p66 = scmp.eq.s32.totalorder %s14, 0
      %p67 = por %p65, %p66
      %s68 = ssub.s32 %s8, %s15
      %p69 = scmp.eq.s32.totalorder %s68, 0
      %s71 = sadd.s32 %s70, 1
      %s72 = scalar_select %p69, %s70, %s71
      %p75 = pneg %p69
      %p76 = scmp.eq.s32.totalorder %s8, 1
      %p77 = por %p75, %p76
      %p78 = scmp.ne.s32.totalorder %s70, %s73
      %p79 = scmp.eq.s32.totalorder %s8, 0
      %p80 = por %p78, %p79
      %p81 = scmp.ne.s32.totalorder %s70, %s73
      %p82 = scmp.eq.s32.totalorder %s13, 1
      %p83 = por %p81, %p82
      %p84 = scmp.ne.s32.totalorder %s73, %s74
      %p85 = scmp.eq.s32.totalorder %s13, 0
      %p86 = por %p84, %p85
      %p87 = scmp.ne.s32.totalorder %s73, %s74
      %p88 = scmp.eq.s32.totalorder %s14, 1
      %p89 = por %p87, %p88
      %p91 = scmp.ne.s32.totalorder %s74, %s90
      %p92 = scmp.eq.s32.totalorder %s14, 0
      %p93 = por %p91, %p92
      %p94 = scmp.le.s32.totalorder 1, %s8
      %p95 = scmp.lt.s32.totalorder %s8, 3
      %p96 = pnand %p94, %p95
      %p97 = pneg %p96
      // Predicated region
      $region9: #{learned_dw_conv_forward.1} parent=5 // pred_check
        _
      $region10: #{learned_dw_conv_forward.1} parent=5 // pred_check_branch
        %99 = sbr.rel (%p96) target = $region12
      $region11: #{learned_dw_conv_forward.1} parent=5 // pred_region
        %s100 = ssub.s32 %s8, 1
      $region12: #{learned_dw_conv_forward.1} parent=5 // pred_fallthru
        _
      %p101 = scmp.lt.s32.totalorder %s8, 2
      // Predicated region
      $region13: #{learned_dw_conv_forward.1} parent=5 // pred_check
        %p102 = pneg %p101
      $region14: #{learned_dw_conv_forward.1} parent=5 // pred_check_branch
        %104 = sbr.rel (%p102) target = $region16
      $region15: #{learned_dw_conv_forward.1} parent=5 // pred_region
        // Predicated region
        $region17: #{learned_dw_conv_forward.1} parent=15 // pred_check
          %p105 = pneg %p28
        $region18: #{learned_dw_conv_forward.1} parent=15 // pred_check_branch
          %107 = sbr.rel (%p105) target = $region20
        $region19: #{learned_dw_conv_forward.1} parent=15 // pred_region
          %s108 = sand.u32 %s18, 1
          %s109 = sand.u32 %s18, 1
          %s110 = smul.addr %s109, 32
          %s111 = scalar_lea.vmem [#allocation2], %s110
          %s112 = smul.addr %s8, 4
          %s113 = smul.addr %s112, 4
          %s114 = scalar_lea.vmem %s0, %s113
          // Predicated region
          $region21: #{learned_dw_conv_forward.1} parent=19 // pred_check
            _
          $region22: #{learned_dw_conv_forward.1} parent=19 // pred_check_branch
            %116 = sbr.rel (0) target = $region24
          $region23: #{learned_dw_conv_forward.1} parent=19 // pred_region
            // Predicated region
            $region25: #{learned_dw_conv_forward.1} parent=23 // pred_check
              _
            $region26: #{learned_dw_conv_forward.1} parent=23 // pred_check_branch
              %118 = sbr.rel (0) target = $region28
            $region27: #{learned_dw_conv_forward.1} parent=23 // pred_region
              loop: start=0, step=1, limit=1
              $region29: #{learned_dw_conv_forward.1} parent=27 // loop_pre_header
                _
              $region30: #{learned_dw_conv_forward.1} parent=27 // loop_header
                %s120 = sphi 0, %s124
                %p121 = scmp.ge.s32.totalorder %s120, 1
                %s125 = sphi %s114, %s114
                %s126 = sphi %s111, %s111
              $region31: #{learned_dw_conv_forward.1} parent=27 // loop_header_branch
                %123 = sbr.rel (%p121) target = $region35
              $region32: #{learned_dw_conv_forward.1} parent=27 // loop_body
                %v127 = vld [vmem:[%s125] sm:$0xff]
                %128 = vst [vmem:[%s126] sm:$0xff] %v127
                %v129 = vld [vmem:[%s125 + $0x8] sm:$0xff]
                %130 = vst [vmem:[%s126 + $0x8] sm:$0xff] %v129
                %v131 = vld [vmem:[%s125 + $0x20] sm:$0xff]
                %132 = vst [vmem:[%s126 + $0x10] sm:$0xff] %v131
                %v133 = vld [vmem:[%s125 + $0x28] sm:$0xff]
                %134 = vst [vmem:[%s126 + $0x18] sm:$0xff] %v133
              $region33: #{learned_dw_conv_forward.1} parent=27 // loop_footer
                %s124 = sadd.s32 1, %s120
              $region34: #{learned_dw_conv_forward.1} parent=27 // loop_footer_branch
                %119 = sbr.rel target = $region30
              $region35: #{learned_dw_conv_forward.1} parent=27 // loop_exit
                _
            $region28: #{learned_dw_conv_forward.1} parent=23 // pred_fallthru
              _
            // Predicated region
            $region36: #{learned_dw_conv_forward.1} parent=23 // pred_check
              _
            $region37: #{learned_dw_conv_forward.1} parent=23 // pred_check_branch
              %136 = sbr.rel target = $region39
            $region38: #{learned_dw_conv_forward.1} parent=23 // pred_region
              _
            $region39: #{learned_dw_conv_forward.1} parent=23 // pred_fallthru
              _
          $region24: #{learned_dw_conv_forward.1} parent=19 // pred_fallthru
            _
          %137 = vnop
        $region20: #{learned_dw_conv_forward.1} parent=15 // pred_fallthru
          _
        // Predicated region
        $region40: #{learned_dw_conv_forward.1} parent=15 // pred_check
          %p138 = pneg %p54
        $region41: #{learned_dw_conv_forward.1} parent=15 // pred_check_branch
          %140 = sbr.rel (%p138) target = $region43
        $region42: #{learned_dw_conv_forward.1} parent=15 // pred_region
          %p141 = scmp.lt.s32.totalorder %s8, 1
          %s142 = scalar_select %p141, %s8, 1
          %s143 = smul.addr %s142, 4
          %s144 = scalar_lea.vmem %s1, %s143
        $region43: #{learned_dw_conv_forward.1} parent=15 // pred_fallthru
          _
      $region16: #{learned_dw_conv_forward.1} parent=5 // pred_fallthru
        _
      %p145 = scmp.le.s32.totalorder 1, %s8
      %p146 = scmp.lt.s32.totalorder %s8, 3
      %p147 = pnand %p145, %p146
      %p148 = pneg %p147
      // Predicated region
      $region44: #{learned_dw_conv_forward.1} parent=5 // pred_check
        _
      $region45: #{learned_dw_conv_forward.1} parent=5 // pred_check_branch
        %150 = sbr.rel (%p147) target = $region47
      $region46: #{learned_dw_conv_forward.1} parent=5 // pred_region
        %s151 = ssub.s32 %s8, 1
        %s152 = sand.u32 %s21, 1
        %s153 = sand.u32 %s21, 1
        %s154 = smul.addr %s153, 32
        %s155 = scalar_lea.vmem [#allocation2], %s154
        // Predicated region
        $region48: #{learned_dw_conv_forward.1} parent=46 // pred_check
          %p156 = pneg %p34
        $region49: #{learned_dw_conv_forward.1} parent=46 // pred_check_branch
          %158 = sbr.rel (%p156) target = $region51
        $region50: #{learned_dw_conv_forward.1} parent=46 // pred_region
          _
        $region51: #{learned_dw_conv_forward.1} parent=46 // pred_fallthru
          _
        %s159 = sand.u32 %s21, 1
        %s160 = sand.u32 %s21, 1
        %s161 = smul.addr %s160, 32
        %s162 = scalar_lea.vmem [#allocation2], %s161
        %p163 = pneg %p34
        %p164 = pneg %p31
        %p165 = scmp.lt.s32.totalorder %s13, 1
        %s166 = scalar_select %p165, %s13, 1
        %s167 = smul.addr %s166, 4
        %s168 = scalar_lea.vmem %s1, %s167
        %p169 = pneg %p60
        %p170 = pneg %p57
        %p171 = pneg %p86
        %p172 = pneg %p83
        %s173 = sand.u32 %s73, 1
        %s174 = sand.u32 %s73, 1
        %s175 = smul.addr %s174, 48
        %s176 = scalar_lea.vmem [#allocation3], %s175
        %p177 = scmp.lt.s32.totalorder %s13, 1
        %s178 = scalar_select %p177, %s13, 1
        %s179 = smul.addr %s178, 4
        %s180 = scalar_lea.vmem %s1, %s179
        %v182 = vld [vmem:[%s180] sm:$0xf]
        %v183 = vld [vmem:[%s155] sm:$0xff]
        %v184 = vld [vmem:[%s155 + $0x8] sm:$0xff]
        %v187 = vunpack.c.l.b16 %v183
        %v188 = vunpack.c.h.b16 %v183
        %v189 = vunpack.c.l.b16 %v184
        %v190 = vpack.c.b16 %v187, %v187
        %v191 = vpack.c.b16 %v188, %v188
        %v192 = vpack.c.b16 %v189, %v189
        %v193 = vunpack.c.h.b16 %v184
        %v194 = vpack.c.b16 %v193, %v193
        %195 = vrot.lane.b32.xlu0 %v190, 127
        %v196 = vpop.permute.xlu0 %195
        %197 = vrot.lane.b32.xlu0 %v191, 127
        %v198 = vpop.permute.xlu0 %197
        %199 = vrot.lane.b32.xlu0 %v192, 127
        %v200 = vpop.permute.xlu0 %199
        %201 = vrot.lane.b32.xlu0 %v194, 127
        %v202 = vpop.permute.xlu0 %201
        %vm203 = vcmask 1039360
        %v204 = vsel %vm203, %v196, %v198
        %v205 = vsel %vm203, %v198, %v200
        %v206 = vsel %vm203, %v200, %v202
        %207 = vrot.lane.b32.xlu0 %v190, 126
        %v208 = vpop.permute.xlu0 %207
        %209 = vrot.lane.b32.xlu0 %v191, 126
        %v210 = vpop.permute.xlu0 %209
        %211 = vrot.lane.b32.xlu0 %v192, 126
        %v212 = vpop.permute.xlu0 %211
        %213 = vrot.lane.b32.xlu0 %v194, 126
        %v214 = vpop.permute.xlu0 %213
        %vm215 = vcmask 1031168
        %v216 = vsel %vm215, %v208, %v210
        %v217 = vsel %vm215, %v210, %v212
        %v218 = vsel %vm215, %v212, %v214
        %219 = vrot.lane.b32.xlu0 %v190, 110
        %v220 = vpop.permute.xlu0 %219
        %221 = vrot.lane.b32.xlu0 %v191, 110
        %v222 = vpop.permute.xlu0 %221
        %223 = vrot.lane.b32.xlu0 %v192, 110
        %v224 = vpop.permute.xlu0 %223
        %225 = vrot.lane.b32.xlu0 %v194, 110
        %v226 = vpop.permute.xlu0 %225
        %vm227 = vcmask 900096
        %v228 = vsel %vm227, %v220, %v222
        %v229 = vsel %vm227, %v222, %v224
        %v230 = vsel %vm227, %v224, %v226
        %231 = vrot.lane.b32.xlu0 %v190, 109
        %v232 = vpop.permute.xlu0 %231
        %233 = vrot.lane.b32.xlu0 %v191, 109
        %v234 = vpop.permute.xlu0 %233
        %235 = vrot.lane.b32.xlu0 %v192, 109
        %v236 = vpop.permute.xlu0 %235
        %237 = vrot.lane.b32.xlu0 %v194, 109
        %v238 = vpop.permute.xlu0 %237
        %vm239 = vcmask 891904
        %v240 = vsel %vm239, %v232, %v234
        %v241 = vsel %vm239, %v234, %v236
        %v242 = vsel %vm239, %v236, %v238
        %243 = vrot.lane.b32.xlu0 %v190, 108
        %v244 = vpop.permute.xlu0 %243
        %245 = vrot.lane.b32.xlu0 %v191, 108
        %v246 = vpop.permute.xlu0 %245
        %247 = vrot.lane.b32.xlu0 %v192, 108
        %v248 = vpop.permute.xlu0 %247
        %249 = vrot.lane.b32.xlu0 %v194, 108
        %v250 = vpop.permute.xlu0 %249
        %vm251 = vcmask 883712
        %v252 = vsel %vm251, %v244, %v246
        %v253 = vsel %vm251, %v246, %v248
        %v254 = vsel %vm251, %v248, %v250
        %255 = vrot.lane.b32.xlu0 %v190, 92
        %v256 = vpop.permute.xlu0 %255
        %257 = vrot.lane.b32.xlu0 %v191, 92
        %v258 = vpop.permute.xlu0 %257
        %259 = vrot.lane.b32.xlu0 %v192, 92
        %v260 = vpop.permute.xlu0 %259
        %261 = vrot.lane.b32.xlu0 %v194, 92
        %v262 = vpop.permute.xlu0 %261
        %vm263 = vcmask 752640
        %v264 = vsel %vm263, %v256, %v258
        %v265 = vsel %vm263, %v258, %v260
        %v266 = vsel %vm263, %v260, %v262
        %267 = vrot.lane.b32.xlu0 %v190, 91
        %v268 = vpop.permute.xlu0 %267
        %269 = vrot.lane.b32.xlu0 %v191, 91
        %v270 = vpop.permute.xlu0 %269
        %271 = vrot.lane.b32.xlu0 %v192, 91
        %v272 = vpop.permute.xlu0 %271
        %273 = vrot.lane.b32.xlu0 %v194, 91
        %v274 = vpop.permute.xlu0 %273
        %vm275 = vcmask 744448
        %v276 = vsel %vm275, %v268, %v270
        %v277 = vsel %vm275, %v270, %v272
        %v278 = vsel %vm275, %v272, %v274
        %279 = vrot.lane.b32.xlu0 %v190, 90
        %v280 = vpop.permute.xlu0 %279
        %281 = vrot.lane.b32.xlu0 %v191, 90
        %v282 = vpop.permute.xlu0 %281
        %283 = vrot.lane.b32.xlu0 %v192, 90
        %v284 = vpop.permute.xlu0 %283
        %285 = vrot.lane.b32.xlu0 %v194, 90
        %v286 = vpop.permute.xlu0 %285
        %vm287 = vcmask 736256
        %v288 = vsel %vm287, %v280, %v282
        %v289 = vsel %vm287, %v282, %v284
        %v290 = vsel %vm287, %v284, %v286
        %vm291 = vcmask 1043456
        %v294 = vsel %vm291, %v190, %v204
        %v298 = vsel %vm291, %v191, %v205
        %v302 = vsel %vm291, %v192, %v206
        %v306 = vsel %vm291, %v216, %v228
        %v310 = vsel %vm291, %v217, %v229
        %v314 = vsel %vm291, %v218, %v230
        %v318 = vsel %vm291, %v240, %v252
        %v322 = vsel %vm291, %v241, %v253
        %v326 = vsel %vm291, %v242, %v254
        %v330 = vsel %vm291, %v264, %v276
        %v334 = vsel %vm291, %v265, %v277
        %v338 = vsel %vm291, %v266, %v278
        %vm340 = vcmask 588800
        %v342 = vsel %vm340, %v182, 0
        %v345 = vsel %vm291, %v288, 0
        %v348 = vsel %vm291, %v289, 0
        %v351 = vsel %vm291, %v290, 0
        %353 = vmatprep.subr.bf16.mxu0 %v298
        %354 = vmatpush1.bf16.msra.mxu0 %v294
        %355 = vmatprep.subr.bf16.mxu0 %v310
        %356 = vmatpush1.bf16.msra.mxu0 %v306
        %357 = vmatprep.subr.bf16.mxu0 %v322
        %358 = vmatpush1.bf16.msra.mxu0 %v318
        %359 = vmatprep.subr.bf16.mxu0 %v334
        %360 = vmatpush1.bf16.msra.mxu0 %v330
        %361 = vmatprep.subr.bf16.mxu0 %v348
        %362 = vmatpush1.bf16.msra.mxu0 %v345
        %363 = vmatprep.subr.bf16.mxu0 0
        %364 = vmatpush1.bf16.msra.mxu0 0
        %365 = vmatprep.subr.bf16.mxu0 0
        %366 = vmatpush1.bf16.msra.mxu0 0
        %367 = vmatprep.subr.bf16.mxu0 0
        %368 = vmatpush1.bf16.msra.mxu0 0
        %369 = vmatprep.subr.bf16.mxu0 0
        %370 = vmatpush1.bf16.msra.mxu0 0
        %371 = vmatprep.subr.bf16.mxu0 0
        %372 = vmatpush1.bf16.msra.mxu0 0
        %373 = vmatprep.subr.bf16.mxu0 0
        %374 = vmatpush1.bf16.msra.mxu0 0
        %375 = vmatprep.subr.bf16.mxu0 0
        %376 = vmatpush1.bf16.msra.mxu0 0
        %377 = vmatprep.subr.bf16.mxu0 0
        %378 = vmatpush1.bf16.msra.mxu0 0
        %379 = vmatprep.subr.bf16.mxu0 0
        %380 = vmatpush1.bf16.msra.mxu0 0
        %381 = vmatprep.subr.bf16.mxu0 0
        %382 = vmatpush1.bf16.msra.mxu0 0
        %383 = vmatprep.subr.bf16.mxu0 0
        %384 = vmatpush1.bf16.msra.mxu0 0
        %385 = vmatprep.mubr.bf16.mxu0 0
        %386 = vmatmul.mubr.bf16.gmra.mrb[0].mxu0 %v342
        %v387 = vpop.f32.mrb[0].mxu0
        %v388 = vadd.f32 0.0, %v387
        %v389 = vpop.f32.mrb[0].mxu0
        %v390 = vadd.f32 0.0, %v389
        %v391 = vpop.f32.mrb[0].mxu0
        %v392 = vpop.f32.mrb[0].mxu0
        %393 = vdwg.mxu0
        %394 = vmatprep.subr.bf16.mxu0 0
        %395 = vmatpush1.bf16.msra.mxu0 %v302
        %396 = vmatprep.subr.bf16.mxu0 0
        %397 = vmatpush1.bf16.msra.mxu0 %v314
        %398 = vmatprep.subr.bf16.mxu0 0
        %399 = vmatpush1.bf16.msra.mxu0 %v326
        %400 = vmatprep.subr.bf16.mxu0 0
        %401 = vmatpush1.bf16.msra.mxu0 %v338
        %402 = vmatprep.subr.bf16.mxu0 0
        %403 = vmatpush1.bf16.msra.mxu0 %v351
        %404 = vmatprep.subr.bf16.mxu0 0
        %405 = vmatpush1.bf16.msra.mxu0 0
        %406 = vmatprep.subr.bf16.mxu0 0
        %407 = vmatpush1.bf16.msra.mxu0 0
        %408 = vmatprep.subr.bf16.mxu0 0
        %409 = vmatpush1.bf16.msra.mxu0 0
        %410 = vmatprep.subr.bf16.mxu0 0
        %411 = vmatpush1.bf16.msra.mxu0 0
        %412 = vmatprep.subr.bf16.mxu0 0
        %413 = vmatpush1.bf16.msra.mxu0 0
        %414 = vmatprep.subr.bf16.mxu0 0
        %415 = vmatpush1.bf16.msra.mxu0 0
        %416 = vmatprep.subr.bf16.mxu0 0
        %417 = vmatpush1.bf16.msra.mxu0 0
        %418 = vmatprep.subr.bf16.mxu0 0
        %419 = vmatpush1.bf16.msra.mxu0 0
        %420 = vmatprep.subr.bf16.mxu0 0
        %421 = vmatpush1.bf16.msra.mxu0 0
        %422 = vmatprep.subr.bf16.mxu0 0
        %423 = vmatpush1.bf16.msra.mxu0 0
        %424 = vmatprep.subr.bf16.mxu0 0
        %425 = vmatpush1.bf16.msra.mxu0 0
        %426 = vmatprep.mubr.bf16.mxu0 0
        %427 = vmatmul.mubr.bf16.gmra.mrb[0].mxu0 %v342
        %v428 = vpop.f32.mrb[0].mxu0
        %v429 = vadd.f32 0.0, %v428
        %v430 = vpop.f32.mrb[0].mxu0
        %v431 = vpop.f32.mrb[0].mxu0
        %v432 = vpop.f32.mrb[0].mxu0
        %433 = vdwg.mxu0
        %434 = vst [vmem:[%s176] sm:$0xff] %v388
        %435 = vst [vmem:[%s176 + $0x8] sm:$0xff] %v390
        %436 = vst [vmem:[%s176 + $0x10] sm:$0xff] %v429
        %s437 = scalar_lea.vmem %s155, 16 [#allocation2]
        %v438 = vld [vmem:[%s437] sm:$0xff]
        %v439 = vld [vmem:[%s437 + $0x8] sm:$0xff]
        %v442 = vunpack.c.l.b16 %v438
        %v443 = vunpack.c.h.b16 %v438
        %v444 = vunpack.c.l.b16 %v439
        %v445 = vpack.c.b16 %v442, %v442
        %v446 = vpack.c.b16 %v443, %v443
        %v447 = vpack.c.b16 %v444, %v444
        %v448 = vunpack.c.h.b16 %v439
        %v449 = vpack.c.b16 %v448, %v448
        %450 = vrot.lane.b32.xlu0 %v445, 127
        %v451 = vpop.permute.xlu0 %450
        %452 = vrot.lane.b32.xlu0 %v446, 127
        %v453 = vpop.permute.xlu0 %452
        %454 = vrot.lane.b32.xlu0 %v447, 127
        %v455 = vpop.permute.xlu0 %454
        %456 = vrot.lane.b32.xlu0 %v449, 127
        %v457 = vpop.permute.xlu0 %456
        %v458 = vsel %vm203, %v451, %v453
        %v459 = vsel %vm203, %v453, %v455
        %v460 = vsel %vm203, %v455, %v457
        %461 = vrot.lane.b32.xlu0 %v445, 126
        %v462 = vpop.permute.xlu0 %461
        %463 = vrot.lane.b32.xlu0 %v446, 126
        %v464 = vpop.permute.xlu0 %463
        %465 = vrot.lane.b32.xlu0 %v447, 126
        %v466 = vpop.permute.xlu0 %465
        %467 = vrot.lane.b32.xlu0 %v449, 126
        %v468 = vpop.permute.xlu0 %467
        %v469 = vsel %vm215, %v462, %v464
        %v470 = vsel %vm215, %v464, %v466
        %v471 = vsel %vm215, %v466, %v468
        %472 = vrot.lane.b32.xlu0 %v445, 110
        %v473 = vpop.permute.xlu0 %472
        %474 = vrot.lane.b32.xlu0 %v446, 110
        %v475 = vpop.permute.xlu0 %474
        %476 = vrot.lane.b32.xlu0 %v447, 110
        %v477 = vpop.permute.xlu0 %476
        %478 = vrot.lane.b32.xlu0 %v449, 110
        %v479 = vpop.permute.xlu0 %478
        %v480 = vsel %vm227, %v473, %v475
        %v481 = vsel %vm227, %v475, %v477
        %v482 = vsel %vm227, %v477, %v479
        %483 = vrot.lane.b32.xlu0 %v445, 109
        %v484 = vpop.permute.xlu0 %483
        %485 = vrot.lane.b32.xlu0 %v446, 109
        %v486 = vpop.permute.xlu0 %485
        %487 = vrot.lane.b32.xlu0 %v447, 109
        %v488 = vpop.permute.xlu0 %487
        %489 = vrot.lane.b32.xlu0 %v449, 109
        %v490 = vpop.permute.xlu0 %489
        %v491 = vsel %vm239, %v484, %v486
        %v492 = vsel %vm239, %v486, %v488
        %v493 = vsel %vm239, %v488, %v490
        %494 = vrot.lane.b32.xlu0 %v445, 108
        %v495 = vpop.permute.xlu0 %494
        %496 = vrot.lane.b32.xlu0 %v446, 108
        %v497 = vpop.permute.xlu0 %496
        %498 = vrot.lane.b32.xlu0 %v447, 108
        %v499 = vpop.permute.xlu0 %498
        %500 = vrot.lane.b32.xlu0 %v449, 108
        %v501 = vpop.permute.xlu0 %500
        %v502 = vsel %vm251, %v495, %v497
        %v503 = vsel %vm251, %v497, %v499
        %v504 = vsel %vm251, %v499, %v501
        %505 = vrot.lane.b32.xlu0 %v445, 92
        %v506 = vpop.permute.xlu0 %505
        %507 = vrot.lane.b32.xlu0 %v446, 92
        %v508 = vpop.permute.xlu0 %507
        %509 = vrot.lane.b32.xlu0 %v447, 92
        %v510 = vpop.permute.xlu0 %509
        %511 = vrot.lane.b32.xlu0 %v449, 92
        %v512 = vpop.permute.xlu0 %511
        %v513 = vsel %vm263, %v506, %v508
        %v514 = vsel %vm263, %v508, %v510
        %v515 = vsel %vm263, %v510, %v512
        %516 = vrot.lane.b32.xlu0 %v445, 91
        %v517 = vpop.permute.xlu0 %516
        %518 = vrot.lane.b32.xlu0 %v446, 91
        %v519 = vpop.permute.xlu0 %518
        %520 = vrot.lane.b32.xlu0 %v447, 91
        %v521 = vpop.permute.xlu0 %520
        %522 = vrot.lane.b32.xlu0 %v449, 91
        %v523 = vpop.permute.xlu0 %522
        %v524 = vsel %vm275, %v517, %v519
        %v525 = vsel %vm275, %v519, %v521
        %v526 = vsel %vm275, %v521, %v523
        %527 = vrot.lane.b32.xlu0 %v445, 90
        %v528 = vpop.permute.xlu0 %527
        %529 = vrot.lane.b32.xlu0 %v446, 90
        %v530 = vpop.permute.xlu0 %529
        %531 = vrot.lane.b32.xlu0 %v447, 90
        %v532 = vpop.permute.xlu0 %531
        %533 = vrot.lane.b32.xlu0 %v449, 90
        %v534 = vpop.permute.xlu0 %533
        %v535 = vsel %vm287, %v528, %v530
        %v536 = vsel %vm287, %v530, %v532
        %v537 = vsel %vm287, %v532, %v534
        %v540 = vsel %vm291, %v445, %v458
        %v544 = vsel %vm291, %v446, %v459
        %v548 = vsel %vm291, %v447, %v460
        %v552 = vsel %vm291, %v469, %v480
        %v556 = vsel %vm291, %v470, %v481
        %v560 = vsel %vm291, %v471, %v482
        %v564 = vsel %vm291, %v491, %v502
        %v568 = vsel %vm291, %v492, %v503
        %v572 = vsel %vm291, %v493, %v504
        %v576 = vsel %vm291, %v513, %v524
        %v580 = vsel %vm291, %v514, %v525
        %v584 = vsel %vm291, %v515, %v526
        %v587 = vsel %vm291, %v535, 0
        %v590 = vsel %vm291, %v536, 0
        %v593 = vsel %vm291, %v537, 0
        %595 = vmatprep.subr.bf16.mxu0 %v544
        %596 = vmatpush1.bf16.msra.mxu0 %v540
        %597 = vmatprep.subr.bf16.mxu0 %v556
        %598 = vmatpush1.bf16.msra.mxu0 %v552
        %599 = vmatprep.subr.bf16.mxu0 %v568
        %600 = vmatpush1.bf16.msra.mxu0 %v564
        %601 = vmatprep.subr.bf16.mxu0 %v580
        %602 = vmatpush1.bf16.msra.mxu0 %v576
        %603 = vmatprep.subr.bf16.mxu0 %v590
        %604 = vmatpush1.bf16.msra.mxu0 %v587
        %605 = vmatprep.subr.bf16.mxu0 0
        %606 = vmatpush1.bf16.msra.mxu0 0
        %607 = vmatprep.subr.bf16.mxu0 0
        %608 = vmatpush1.bf16.msra.mxu0 0
        %609 = vmatprep.subr.bf16.mxu0 0
        %610 = vmatpush1.bf16.msra.mxu0 0
        %611 = vmatprep.subr.bf16.mxu0 0
        %612 = vmatpush1.bf16.msra.mxu0 0
        %613 = vmatprep.subr.bf16.mxu0 0
        %614 = vmatpush1.bf16.msra.mxu0 0
        %615 = vmatprep.subr.bf16.mxu0 0
        %616 = vmatpush1.bf16.msra.mxu0 0
        %617 = vmatprep.subr.bf16.mxu0 0
        %618 = vmatpush1.bf16.msra.mxu0 0
        %619 = vmatprep.subr.bf16.mxu0 0
        %620 = vmatpush1.bf16.msra.mxu0 0
        %621 = vmatprep.subr.bf16.mxu0 0
        %622 = vmatpush1.bf16.msra.mxu0 0
        %623 = vmatprep.subr.bf16.mxu0 0
        %624 = vmatpush1.bf16.msra.mxu0 0
        %625 = vmatprep.subr.bf16.mxu0 0
        %626 = vmatpush1.bf16.msra.mxu0 0
        %627 = vmatprep.mubr.bf16.mxu0 0
        %628 = vmatmul.mubr.bf16.gmra.mrb[0].mxu0 %v342
        %v629 = vpop.f32.mrb[0].mxu0
        %v630 = vadd.f32 0.0, %v629
        %v631 = vpop.f32.mrb[0].mxu0
        %v632 = vadd.f32 0.0, %v631
        %v633 = vpop.f32.mrb[0].mxu0
        %v634 = vpop.f32.mrb[0].mxu0
        %635 = vdwg.mxu0
        %636 = vmatprep.subr.bf16.mxu0 0
        %637 = vmatpush1.bf16.msra.mxu0 %v548
        %638 = vmatprep.subr.bf16.mxu0 0
        %639 = vmatpush1.bf16.msra.mxu0 %v560
        %640 = vmatprep.subr.bf16.mxu0 0
        %641 = vmatpush1.bf16.msra.mxu0 %v572
        %642 = vmatprep.subr.bf16.mxu0 0
        %643 = vmatpush1.bf16.msra.mxu0 %v584
        %644 = vmatprep.subr.bf16.mxu0 0
        %645 = vmatpush1.bf16.msra.mxu0 %v593
        %646 = vmatprep.subr.bf16.mxu0 0
        %647 = vmatpush1.bf16.msra.mxu0 0
        %648 = vmatprep.subr.bf16.mxu0 0
        %649 = vmatpush1.bf16.msra.mxu0 0
        %650 = vmatprep.subr.bf16.mxu0 0
        %651 = vmatpush1.bf16.msra.mxu0 0
        %652 = vmatprep.subr.bf16.mxu0 0
        %653 = vmatpush1.bf16.msra.mxu0 0
        %654 = vmatprep.subr.bf16.mxu0 0
        %655 = vmatpush1.bf16.msra.mxu0 0
        %656 = vmatprep.subr.bf16.mxu0 0
        %657 = vmatpush1.bf16.msra.mxu0 0
        %658 = vmatprep.subr.bf16.mxu0 0
        %659 = vmatpush1.bf16.msra.mxu0 0
        %660 = vmatprep.subr.bf16.mxu0 0
        %661 = vmatpush1.bf16.msra.mxu0 0
        %662 = vmatprep.subr.bf16.mxu0 0
        %663 = vmatpush1.bf16.msra.mxu0 0
        %664 = vmatprep.subr.bf16.mxu0 0
        %665 = vmatpush1.bf16.msra.mxu0 0
        %666 = vmatprep.subr.bf16.mxu0 0
        %667 = vmatpush1.bf16.msra.mxu0 0
        %668 = vmatprep.mubr.bf16.mxu0 0
        %669 = vmatmul.mubr.bf16.gmra.mrb[0].mxu0 %v342
        %v670 = vpop.f32.mrb[0].mxu0
        %v671 = vadd.f32 0.0, %v670
        %v672 = vpop.f32.mrb[0].mxu0
        %v673 = vpop.f32.mrb[0].mxu0
        %v674 = vpop.f32.mrb[0].mxu0
        %675 = vdwg.mxu0
        %s676 = scalar_lea.vmem %s176, 24 [#allocation3]
        %677 = vst [vmem:[%s676] sm:$0xff] %v630
        %678 = vst [vmem:[%s676 + $0x8] sm:$0xff] %v632
        %679 = vst [vmem:[%s676 + $0x10] sm:$0xff] %v671
        %s680 = sand.u32 %s73, 1
        %s681 = sand.u32 %s73, 1
        %s682 = smul.addr %s681, 48
        %s683 = scalar_lea.vmem [#allocation3], %s682
        // Predicated region
        $region52: #{learned_dw_conv_forward.1} parent=46 // pred_check
          %p684 = pneg %p83
        $region53: #{learned_dw_conv_forward.1} parent=46 // pred_check_branch
          %686 = sbr.rel (%p684) target = $region55
        $region54: #{learned_dw_conv_forward.1} parent=46 // pred_region
          %s687 = smul.addr %s13, 3
          %s688 = smul.addr %s687, 8
          %s689 = scalar_lea.vmem %s2, %s688
          // Predicated region
          $region56: #{learned_dw_conv_forward.1} parent=54 // pred_check
            _
          $region57: #{learned_dw_conv_forward.1} parent=54 // pred_check_branch
            %691 = sbr.rel (0) target = $region59
          $region58: #{learned_dw_conv_forward.1} parent=54 // pred_region
            // Predicated region
            $region60: #{learned_dw_conv_forward.1} parent=58 // pred_check
              _
            $region61: #{learned_dw_conv_forward.1} parent=58 // pred_check_branch
              %693 = sbr.rel (0) target = $region63
            $region62: #{learned_dw_conv_forward.1} parent=58 // pred_region
              loop: start=0, step=1, limit=1
              $region64: #{learned_dw_conv_forward.1} parent=62 // loop_pre_header
                _
              $region65: #{learned_dw_conv_forward.1} parent=62 // loop_header
                %s695 = sphi 0, %s699
                %p696 = scmp.ge.s32.totalorder %s695, 1
                %s700 = sphi %s683, %s683
                %s701 = sphi %s689, %s689
              $region66: #{learned_dw_conv_forward.1} parent=62 // loop_header_branch
                %698 = sbr.rel (%p696) target = $region70
              $region67: #{learned_dw_conv_forward.1} parent=62 // loop_body
                %v702 = vld [vmem:[%s700] sm:$0xff]
                %703 = vst [vmem:[%s701] sm:$0xff] %v702
                %v704 = vld [vmem:[%s700 + $0x8] sm:$0xff]
                %705 = vst [vmem:[%s701 + $0x8] sm:$0xff] %v704
                %v706 = vld [vmem:[%s700 + $0x10] sm:$0xff]
                %707 = vst [vmem:[%s701 + $0x10] sm:$0xff] %v706
                %v708 = vld [vmem:[%s700 + $0x18] sm:$0xff]
                %709 = vst [vmem:[%s701 + $0x30] sm:$0xff] %v708
                %v710 = vld [vmem:[%s700 + $0x20] sm:$0xff]
                %711 = vst [vmem:[%s701 + $0x38] sm:$0xff] %v710
                %v712 = vld [vmem:[%s700 + $0x28] sm:$0xff]
                %713 = vst [vmem:[%s701 + $0x40] sm:$0xff] %v712
              $region68: #{learned_dw_conv_forward.1} parent=62 // loop_footer
                %s699 = sadd.s32 1, %s695
              $region69: #{learned_dw_conv_forward.1} parent=62 // loop_footer_branch
                %694 = sbr.rel target = $region65
              $region70: #{learned_dw_conv_forward.1} parent=62 // loop_exit
                _
            $region63: #{learned_dw_conv_forward.1} parent=58 // pred_fallthru
              _
            // Predicated region
            $region71: #{learned_dw_conv_forward.1} parent=58 // pred_check
              _
            $region72: #{learned_dw_conv_forward.1} parent=58 // pred_check_branch
              %715 = sbr.rel target = $region74
            $region73: #{learned_dw_conv_forward.1} parent=58 // pred_region
              _
            $region74: #{learned_dw_conv_forward.1} parent=58 // pred_fallthru
              _
          $region59: #{learned_dw_conv_forward.1} parent=54 // pred_fallthru
            _
          %716 = vnop
        $region55: #{learned_dw_conv_forward.1} parent=46 // pred_fallthru
          _
      $region47: #{learned_dw_conv_forward.1} parent=5 // pred_fallthru
        _
      %p717 = scmp.le.s32.totalorder 2, %s8
      // Predicated region
      $region75: #{learned_dw_conv_forward.1} parent=5 // pred_check
        %p718 = pneg %p717
      $region76: #{learned_dw_conv_forward.1} parent=5 // pred_check_branch
        %720 = sbr.rel (%p718) target = $region78
      $region77: #{learned_dw_conv_forward.1} parent=5 // pred_region
        %s721 = ssub.s32 %s8, 2
        // Predicated region
        $region79: #{learned_dw_conv_forward.1} parent=77 // pred_check
          %p722 = pneg %p89
        $region80: #{learned_dw_conv_forward.1} parent=77 // pred_check_branch
          %724 = sbr.rel (%p722) target = $region82
        $region81: #{learned_dw_conv_forward.1} parent=77 // pred_region
          %s725 = sand.u32 %s74, 1
          %s726 = sand.u32 %s74, 1
          %s727 = smul.addr %s726, 48
          %s728 = scalar_lea.vmem [#allocation3], %s727
        $region82: #{learned_dw_conv_forward.1} parent=77 // pred_fallthru
          _
      $region78: #{learned_dw_conv_forward.1} parent=5 // pred_fallthru
        _
    $region6: #{learned_dw_conv_forward.1} parent=1 // loop_footer
      %s12 = sadd.s32 1, %s8
    $region7: #{learned_dw_conv_forward.1} parent=1 // loop_footer_branch
      %7 = sbr.rel target = $region3
    $region8: #{learned_dw_conv_forward.1} parent=1 // loop_exit
      _

</llo_original>
